<compile_context>
chip_gen: v5e
topology: v5e:2x2
jax: 0.10.0
libtpu: 0.0.40
codegen_flags: <defaults>
</compile_context>

<pallas_src>
import jax
import jax.numpy as jnp
from jax import lax
from jax.experimental import pallas as pl
from jax.experimental.pallas import tpu as pltpu

D_MODEL = 32
N_ATOM = 120     # atomic-number vocabulary
N_POS = 3        # xyz position
HEAD_PAD = 128   # lane-dense padded width for the fused head output


def _round_up(x, m):
    return (x + m - 1) // m * m


def _heads_kernel(x_ref, w2_ref, b2_ref, wa_ref, wp_ref, bbig_ref, out_ref):
    x = x_ref[...]                                                   # (rt, D)

    # Position hidden layer (the only remaining layer-1 matmul).
    y = jnp.dot(x, w2_ref[...], preferred_element_type=jnp.float32) + b2_ref[...]
    y = jnp.maximum(y, 0.0)                                          # ReLU (pos path only)

    # Fused head: lanes 0:120 = atom logits (x @ (W1@Wa) + (b1@Wa + ba)),
    #             lanes 120:123 = positions (y @ Wp + bp), lanes 123:128 = 0.
    z = (jnp.dot(x, wa_ref[...], preferred_element_type=jnp.float32)
         + jnp.dot(y, wp_ref[...], preferred_element_type=jnp.float32)
         + bbig_ref[...])                                            # (rt, 128)

    # Softmax over the atom lanes only; single iota reused for mask and merge.
    lane = lax.broadcasted_iota(jnp.int32, z.shape, 1)
    is_atom = lane < N_ATOM
    logits = jnp.where(is_atom, z, -1e30)                            # exp -> 0 on non-atom lanes
    m = jnp.max(logits, axis=-1, keepdims=True)
    e = jnp.exp(logits - m)
    s = jnp.sum(e, axis=-1, keepdims=True)
    inv = pl.reciprocal(s, approx=False)                             # keep 1e-5 tolerance

    # Single lane-dense store: atom probs on lanes <120, raw z (positions / zeros) elsewhere.
    out_ref[...] = jnp.where(is_atom, e * inv, z)


def init_params(key, d_model=D_MODEL):
    """Deterministic synthetic init. PyTorch nn.Linear weight is (out, in);
    we store the transposed (in, out) matrices so the kernel does x @ W."""
    ks = jax.random.split(key, 8)
    s = 1.0 / jnp.sqrt(d_model)
    return dict(
        w1=jax.random.normal(ks[0], (d_model, d_model), jnp.float32) * s,
        b1=jax.random.normal(ks[1], (1, d_model), jnp.float32) * s,
        wa=jax.random.normal(ks[2], (d_model, N_ATOM), jnp.float32) * s,
        ba=jax.random.normal(ks[3], (1, N_ATOM), jnp.float32) * s,
        w2=jax.random.normal(ks[4], (d_model, d_model), jnp.float32) * s,
        b2=jax.random.normal(ks[5], (1, d_model), jnp.float32) * s,
        wp=jax.random.normal(ks[6], (d_model, N_POS), jnp.float32) * s,
        bp=jax.random.normal(ks[7], (1, N_POS), jnp.float32) * s,
    )


def _pack_params(params):
    """Fold the atom path (W1@Wa, b1@Wa+ba) and pad head weights to 128 lanes."""
    d = params["w1"].shape[0]
    w1a = params["w1"] @ params["wa"]                                # (D, 120)
    b1a = params["b1"] @ params["wa"] + params["ba"]                 # (1, 120)

    wa_pad = jnp.zeros((d, HEAD_PAD), jnp.float32).at[:, :N_ATOM].set(w1a)
    wp_pad = jnp.zeros((d, HEAD_PAD), jnp.float32).at[:, N_ATOM:N_ATOM + N_POS].set(params["wp"])

    bbig = jnp.zeros((1, HEAD_PAD), jnp.float32)
    bbig = bbig.at[:, :N_ATOM].set(b1a)
    bbig = bbig.at[:, N_ATOM:N_ATOM + N_POS].set(params["bp"])
    return params["w2"], params["b2"], wa_pad, wp_pad, bbig


def crystal_bert_forward(bert_input, mask, params, row_tile=4096):
    """Returns (atom_probs [B,S,120], positions [B,S,3])."""
    del mask  # TODO(synk): only consumed by the missing BERT encoder.
    x = bert_input  # stand-in for self.bert(bert_input, mask)
    B, S, D = x.shape
    assert D == D_MODEL
    N = B * S

    # Adaptive row tile: big for throughput, but never larger than ceil(N/2)
    # (rounded up to the 8-sublane granule) so v7x gets >= 2 grid steps for
    # its two TensorCores; v5e/v6e are single-TC and unaffected.
    rt = max(8, min(row_tile, _round_up((N + 1) // 2, 8)))
    n_pad = _round_up(N, rt)
    x2 = x.reshape(N, D)
    if n_pad != N:
        x2 = jnp.pad(x2, ((0, n_pad - N), (0, 0)))

    w2, b2, wa_pad, wp_pad, bbig = _pack_params(params)

    full = lambda shape: pl.BlockSpec(shape, lambda i: (0, 0))
    grid_spec = pltpu.PrefetchScalarGridSpec(
        num_scalar_prefetch=0,
        grid=(n_pad // rt,),
        in_specs=[
            pl.BlockSpec((rt, D), lambda i: (i, 0)),       # x rows
            full((D, D)), full((1, D)),                    # position layer-1 W2, b2
            full((D, HEAD_PAD)),                           # fused atom weight (W1@Wa, padded)
            full((D, HEAD_PAD)),                           # padded position weight Wp
            full((1, HEAD_PAD)),                           # fused bias
        ],
        out_specs=pl.BlockSpec((rt, HEAD_PAD), lambda i: (i, 0)),  # single lane-dense slab
    )

    out = pl.pallas_call(
        _heads_kernel,
        grid_spec=grid_spec,
        out_shape=jax.ShapeDtypeStruct((n_pad, HEAD_PAD), jnp.float32),
        compiler_params=pltpu.CompilerParams(dimension_semantics=("parallel",)),
    )(x2, w2, b2, wa_pad, wp_pad, bbig)

    atom = out[:N, :N_ATOM].reshape(B, S, N_ATOM)
    pos = out[:N, N_ATOM:N_ATOM + N_POS].reshape(B, S, N_POS)
    return atom, pos


def _reference(x, params):
    h = x @ params["w1"] + params["b1"][0]
    atom = jax.nn.softmax(h @ params["wa"] + params["ba"][0], axis=-1)
    h2 = jnp.maximum(x @ params["w2"] + params["b2"][0], 0.0)
    pos = h2 @ params["wp"] + params["bp"][0]
    return atom, pos


if __name__ == "__main__":
    key = jax.random.PRNGKey(0)
    k_x, k_p = jax.random.split(key)

    B, S = 2, 8
    bert_input = jax.random.normal(k_x, (B, S, D_MODEL), jnp.float32)
    mask = jnp.ones((B, S), jnp.int32)
    params = init_params(k_p)

    atom, pos = crystal_bert_forward(bert_input, mask, params)
    jax.block_until_ready((atom, pos))

    ref_atom, ref_pos = _reference(bert_input, params)
    assert atom.shape == (B, S, N_ATOM) and pos.shape == (B, S, N_POS)
    assert jnp.allclose(atom, ref_atom, atol=1e-5, rtol=1e-5)
    assert jnp.allclose(pos, ref_pos, atol=1e-5, rtol=1e-5)

    print("KERNEL_OK")
</pallas_src>

<mosaic_0001>
module attributes {stable_mosaic.version = 11 : i64} {
  func.func @_heads_kernel(%arg0: i32, %arg1: memref<8x32xf32, #tpu.memory_space<vmem>>, %arg2: memref<32x32xf32, #tpu.memory_space<vmem>>, %arg3: memref<1x32xf32, #tpu.memory_space<vmem>>, %arg4: memref<32x128xf32, #tpu.memory_space<vmem>>, %arg5: memref<32x128xf32, #tpu.memory_space<vmem>>, %arg6: memref<1x128xf32, #tpu.memory_space<vmem>>, %arg7: memref<8x128xf32, #tpu.memory_space<vmem>>) attributes {dimension_semantics = [#tpu.dimension_semantics<parallel>], iteration_bounds = array<i64: 2>, scalar_prefetch = 0 : i64, scratch_operands = 0 : i64, tpu.core_type = #tpu.core_type<tc>, window_params = [{transform_indices = @transform_0, window_bounds = array<i64: 8, 32>}, {pipeline_mode = #tpu.pipeline_mode<synchronous>, transform_indices = @transform_1, window_bounds = array<i64: 32, 32>}, {pipeline_mode = #tpu.pipeline_mode<synchronous>, transform_indices = @transform_2, window_bounds = array<i64: 1, 32>}, {pipeline_mode = #tpu.pipeline_mode<synchronous>, transform_indices = @transform_3, window_bounds = array<i64: 32, 128>}, {pipeline_mode = #tpu.pipeline_mode<synchronous>, transform_indices = @transform_4, window_bounds = array<i64: 32, 128>}, {pipeline_mode = #tpu.pipeline_mode<synchronous>, transform_indices = @transform_5, window_bounds = array<i64: 1, 128>}, {transform_indices = @transform_6, window_bounds = array<i64: 8, 128>}]} {
    %c0 = arith.constant 0 : index
    %c0_0 = arith.constant 0 : index
    %0 = vector.load %arg1[%c0, %c0_0] : memref<8x32xf32, #tpu.memory_space<vmem>>, vector<8x32xf32>
    %c0_1 = arith.constant 0 : index
    %c0_2 = arith.constant 0 : index
    %1 = vector.load %arg2[%c0_1, %c0_2] : memref<32x32xf32, #tpu.memory_space<vmem>>, vector<32x32xf32>
    %cst = arith.constant dense<0.000000e+00> : vector<8x32xf32>
    %2 = tpu.matmul %0, %1, %cst {dimension_numbers = #tpu.dot_dimension_numbers<[1], [0], [0], [1], [0, 0, 1, 1], [], []>} : vector<8x32xf32>, vector<32x32xf32>, vector<8x32xf32> -> vector<8x32xf32>
    %c0_3 = arith.constant 0 : index
    %c0_4 = arith.constant 0 : index
    %3 = vector.load %arg3[%c0_3, %c0_4] : memref<1x32xf32, #tpu.memory_space<vmem>>, vector<1x32xf32>
    %4 = vector.broadcast %3 : vector<1x32xf32> to vector<8x32xf32>
    %5 = arith.addf %2, %4 : vector<8x32xf32>
    %cst_5 = arith.constant 0.000000e+00 : f32
    %6 = vector.broadcast %cst_5 : f32 to vector<8x32xf32>
    %7 = arith.maximumf %5, %6 : vector<8x32xf32>
    %c0_6 = arith.constant 0 : index
    %c0_7 = arith.constant 0 : index
    %8 = vector.load %arg4[%c0_6, %c0_7] : memref<32x128xf32, #tpu.memory_space<vmem>>, vector<32x128xf32>
    %cst_8 = arith.constant dense<0.000000e+00> : vector<8x128xf32>
    %9 = tpu.matmul %0, %8, %cst_8 {dimension_numbers = #tpu.dot_dimension_numbers<[1], [0], [0], [1], [0, 0, 1, 1], [], []>} : vector<8x32xf32>, vector<32x128xf32>, vector<8x128xf32> -> vector<8x128xf32>
    %c0_9 = arith.constant 0 : index
    %c0_10 = arith.constant 0 : index
    %10 = vector.load %arg5[%c0_9, %c0_10] : memref<32x128xf32, #tpu.memory_space<vmem>>, vector<32x128xf32>
    %cst_11 = arith.constant dense<0.000000e+00> : vector<8x128xf32>
    %11 = tpu.matmul %7, %10, %cst_11 {dimension_numbers = #tpu.dot_dimension_numbers<[1], [0], [0], [1], [0, 0, 1, 1], [], []>} : vector<8x32xf32>, vector<32x128xf32>, vector<8x128xf32> -> vector<8x128xf32>
    %12 = arith.addf %9, %11 : vector<8x128xf32>
    %c0_12 = arith.constant 0 : index
    %c0_13 = arith.constant 0 : index
    %13 = vector.load %arg6[%c0_12, %c0_13] : memref<1x128xf32, #tpu.memory_space<vmem>>, vector<1x128xf32>
    %14 = vector.broadcast %13 : vector<1x128xf32> to vector<8x128xf32>
    %15 = arith.addf %12, %14 : vector<8x128xf32>
    %16 = tpu.iota {dimensions = array<i32: 1>} : vector<8x128xi32>
    %c120_i32 = arith.constant 120 : i32
    %17 = vector.broadcast %c120_i32 : i32 to vector<8x128xi32>
    %18 = arith.cmpi slt, %16, %17 : vector<8x128xi32>
    %cst_14 = arith.constant -1.000000e+30 : f32
    %19 = vector.broadcast %cst_14 : f32 to vector<8x128xf32>
    %20 = arith.select %18, %15, %19 : vector<8x128xi1>, vector<8x128xf32>
    %cst_15 = arith.constant dense<0xFF800000> : vector<8xf32>
    %21 = vector.multi_reduction <maximumf>, %20, %cst_15 [1] : vector<8x128xf32> to vector<8xf32>
    %22 = vector.shape_cast %21 : vector<8xf32> to vector<8x1xf32>
    %23 = vector.broadcast %22 : vector<8x1xf32> to vector<8x128xf32>
    %24 = arith.subf %20, %23 : vector<8x128xf32>
    %25 = math.exp %24 : vector<8x128xf32>
    %cst_16 = arith.constant dense<0.000000e+00> : vector<8xf32>
    %26 = vector.multi_reduction <add>, %25, %cst_16 [1] : vector<8x128xf32> to vector<8xf32>
    %27 = vector.shape_cast %26 : vector<8xf32> to vector<8x1xf32>
    %28 = tpu.reciprocal %27 : vector<8x1xf32> -> vector<8x1xf32>
    %29 = vector.broadcast %28 : vector<8x1xf32> to vector<8x128xf32>
    %30 = arith.mulf %25, %29 : vector<8x128xf32>
    %31 = arith.select %18, %30, %15 : vector<8x128xi1>, vector<8x128xf32>
    %c0_17 = arith.constant 0 : index
    %c0_18 = arith.constant 0 : index
    %32 = vector.load %arg7[%c0_17, %c0_18] : memref<8x128xf32, #tpu.memory_space<vmem>>, vector<8x128xf32>
    tpu.vector_store %arg7[%c0_17, %c0_18], %31 {strides = array<i32>} : memref<8x128xf32, #tpu.memory_space<vmem>>, vector<8x128xf32>,
    return
  }
  func.func @transform_0(%arg0: i32) -> (i32, i32) {
    %c0_i32 = arith.constant 0 : i32
    %c0_i32_0 = arith.constant 0 : i32
    return %arg0, %c0_i32 : i32, i32
  }
  func.func @transform_1(%arg0: i32) -> (i32, i32) {
    %c0_i32 = arith.constant 0 : i32
    %c0_i32_0 = arith.constant 0 : i32
    %c0_i32_1 = arith.constant 0 : i32
    return %c0_i32, %c0_i32_0 : i32, i32
  }
  func.func @transform_2(%arg0: i32) -> (i32, i32) {
    %c0_i32 = arith.constant 0 : i32
    %c0_i32_0 = arith.constant 0 : i32
    %c0_i32_1 = arith.constant 0 : i32
    return %c0_i32, %c0_i32_0 : i32, i32
  }
  func.func @transform_3(%arg0: i32) -> (i32, i32) {
    %c0_i32 = arith.constant 0 : i32
    %c0_i32_0 = arith.constant 0 : i32
    %c0_i32_1 = arith.constant 0 : i32
    return %c0_i32, %c0_i32_0 : i32, i32
  }
  func.func @transform_4(%arg0: i32) -> (i32, i32) {
    %c0_i32 = arith.constant 0 : i32
    %c0_i32_0 = arith.constant 0 : i32
    %c0_i32_1 = arith.constant 0 : i32
    return %c0_i32, %c0_i32_0 : i32, i32
  }
  func.func @transform_5(%arg0: i32) -> (i32, i32) {
    %c0_i32 = arith.constant 0 : i32
    %c0_i32_0 = arith.constant 0 : i32
    %c0_i32_1 = arith.constant 0 : i32
    return %c0_i32, %c0_i32_0 : i32, i32
  }
  func.func @transform_6(%arg0: i32) -> (i32, i32) {
    %c0_i32 = arith.constant 0 : i32
    %c0_i32_0 = arith.constant 0 : i32
    return %arg0, %c0_i32 : i32, i32
  }
}

</mosaic_0001>

<llo_original>
// kernel: tpu_custom_call.1
$region0: #{tpu_custom_call.1}
  #allocation0 [shape = 'u32[]', space=smem, size = 0x4, offset = 0x4, fixed_abs, tag = 'smem constant byte address 0x4 - core index']
  #allocation1 [shape = 'u32[72,128]{1,0:T(1,128)}', space=vmem, size = 0x9000, scoped, tag = 'internal scratch']
  %s0 = inlined_call_operand.hbm [shape: f32[16,32], index: 0, kind: input, shape index: {}]
  %s1 = inlined_call_operand.hbm [shape: f32[32,32], index: 1, kind: input, shape index: {}]
  %s2 = inlined_call_operand.vmem [shape: f32[1,32], index: 2, kind: input, shape index: {}]
  %s3 = inlined_call_operand.hbm [shape: f32[32,128], index: 3, kind: input, shape index: {}]
  %s4 = inlined_call_operand.hbm [shape: f32[32,128], index: 4, kind: input, shape index: {}]
  %s5 = inlined_call_operand.vmem [shape: f32[1,128], index: 5, kind: input, shape index: {}]
  %s6 = inlined_call_operand.hbm [shape: f32[16,128], index: 6, kind: output, shape index: {}]
  %s7 = sld [smem:[#allocation0]]
  $region73: #{tpu_custom_call.1} parent=0
    _
  %s9 = ssub.s32 1, %s7
  %s10 = scalar_select 0, %s9, %s7
  $region1: #{tpu_custom_call.1} parent=0
    #allocation2 [shape = 'u8[8192]{0}', space=vmem, size = 0x2000, scoped, tag = 'input window, operand 0']
    #allocation3 [shape = 's32[2]{0}', space=sflag, size = 0x8, scoped, tag = 'scoped memory for tpu_custom_call.1']
    #allocation4 [shape = 's32[2]{0}', space=sflag, size = 0x8, scoped, tag = 'scoped memory for tpu_custom_call.1']
    #allocation5 [shape = 'u8[16384]{0}', space=vmem, size = 0x4000, scoped, tag = 'input window, operand 1, single buffered']
    #allocation6 [shape = 's32[1]{0}', space=sflag, size = 0x4, scoped, tag = 'scoped memory for tpu_custom_call.1']
    #allocation7 [shape = 'u8[16384]{0}', space=vmem, size = 0x4000, scoped, tag = 'input window, operand 3, single buffered']
    #allocation8 [shape = 'u8[16384]{0}', space=vmem, size = 0x4000, scoped, tag = 'input window, operand 4, single buffered']
    #allocation9 [shape = 's32[1]{0}', space=sflag, size = 0x4, scoped, tag = 'scoped memory for tpu_custom_call.1']
    #allocation10 [shape = 'u8[8192]{0}', space=vmem, size = 0x2000, scoped, tag = 'output window, operand 0']
    %11 = vsyncpa [#allocation3], 0
    %s12 = scalar_lea.sflag [#allocation3], 1
    %13 = vsyncpa %s12, 0
    %14 = vsyncpa [#allocation6], 0
    %15 = vsyncpa [#allocation9], 0
    %16 = vsyncpa [#allocation4], 0
    %s17 = scalar_lea.sflag [#allocation4], 1
    %18 = vsyncpa %s17, 0
    loop: start=0, step=1, limit=4
    $region2: #{tpu_custom_call.1} parent=1 // loop_pre_header
      _
    $region3: #{tpu_custom_call.1} parent=1 // loop_header
      %s20 = sphi 0, %s24
      %p21 = scmp.ge.s32.totalorder %s20, 4
      %s30 = sphi 0, %s32
      %s33 = sphi 0, %s30
      %s34 = sphi 0, %s33
      %s50 = sphi 0, %s34
      %s54 = sphi 0, %s54
      %s56 = sphi 0, %s54
      %s57 = sphi 0, %s56
      %s71 = sphi 0, %s57
      %s75 = sphi 0, %s75
      %s77 = sphi 0, %s75
      %s78 = sphi 0, %s77
      %s92 = sphi 0, %s78
      %s96 = sphi 0, %s96
      %s98 = sphi 0, %s96
      %s99 = sphi 0, %s98
      %s113 = sphi 0, %s99
      %s117 = sphi 0, %s117
      %s119 = sphi 0, %s117
      %s120 = sphi 0, %s119
      %s134 = sphi 0, %s120
      %s138 = sphi 0, %s138
      %s140 = sphi 0, %s138
      %s141 = sphi 0, %s140
      %s155 = sphi 0, %s141
      %s161 = sphi 0, %s163
      %s164 = sphi 0, %s161
      %s165 = sphi 0, %s164
      %s181 = sphi 0, %s165
    $region4: #{tpu_custom_call.1} parent=1 // loop_header_branch
      %23 = sbr.rel (%p21) target = $region8
    $region5: #{tpu_custom_call.1} parent=1 // loop_body
      %s25 = ssub.s32 %s20, 1
      %s26 = ssub.s32 %s20, 2
      %s27 = sadd.s32 %s20, 1
      %s28 = ssub.s32 %s20, %s27
      %p29 = scmp.eq.s32.totalorder %s28, 0
      %s31 = sadd.s32 %s30, 1
      %s32 = scalar_select %p29, %s30, %s31
      %p35 = pneg %p29
      %p36 = scmp.eq.s32.totalorder %s20, 1
      %p37 = por %p35, %p36
      %p38 = scmp.ne.s32.totalorder %s30, %s33
      %p39 = scmp.eq.s32.totalorder %s20, 0
      %p40 = por %p38, %p39
      %p41 = scmp.ne.s32.totalorder %s30, %s33
      %p42 = scmp.eq.s32.totalorder %s25, 1
      %p43 = por %p41, %p42
      %p44 = scmp.ne.s32.totalorder %s33, %s34
      %p45 = scmp.eq.s32.totalorder %s25, 0
      %p46 = por %p44, %p45
      %p47 = scmp.ne.s32.totalorder %s33, %s34
      %p48 = scmp.eq.s32.totalorder %s26, 1
      %p49 = por %p47, %p48
      %p51 = scmp.ne.s32.totalorder %s34, %s50
      %p52 = scmp.eq.s32.totalorder %s26, 0
      %p53 = por %p51, %p52
      %s55 = sadd.s32 %s54, 1
      %p58 = scmp.eq.s32.totalorder %s20, 1
      %p59 = scmp.ne.s32.totalorder %s54, %s56
      %p60 = scmp.eq.s32.totalorder %s20, 0
      %p61 = por %p59, %p60
      %p62 = scmp.ne.s32.totalorder %s54, %s56
      %p63 = scmp.eq.s32.totalorder %s25, 1
      %p64 = por %p62, %p63
      %p65 = scmp.ne.s32.totalorder %s56, %s57
      %p66 = scmp.eq.s32.totalorder %s25, 0
      %p67 = por %p65, %p66
      %p68 = scmp.ne.s32.totalorder %s56, %s57
      %p69 = scmp.eq.s32.totalorder %s26, 1
      %p70 = por %p68, %p69
      %p72 = scmp.ne.s32.totalorder %s57, %s71
      %p73 = scmp.eq.s32.totalorder %s26, 0
      %p74 = por %p72, %p73
      %s76 = sadd.s32 %s75, 1
      %p79 = scmp.eq.s32.totalorder %s20, 1
      %p80 = scmp.ne.s32.totalorder %s75, %s77
      %p81 = scmp.eq.s32.totalorder %s20, 0
      %p82 = por %p80, %p81
      %p83 = scmp.ne.s32.totalorder %s75, %s77
      %p84 = scmp.eq.s32.totalorder %s25, 1
      %p85 = por %p83, %p84
      %p86 = scmp.ne.s32.totalorder %s77, %s78
      %p87 = scmp.eq.s32.totalorder %s25, 0
      %p88 = por %p86, %p87
      %p89 = scmp.ne.s32.totalorder %s77, %s78
      %p90 = scmp.eq.s32.totalorder %s26, 1
      %p91 = por %p89, %p90
      %p93 = scmp.ne.s32.totalorder %s78, %s92
      %p94 = scmp.eq.s32.totalorder %s26, 0
      %p95 = por %p93, %p94
      %s97 = sadd.s32 %s96, 1
      %p100 = scmp.eq.s32.totalorder %s20, 1
      %p101 = scmp.ne.s32.totalorder %s96, %s98
      %p102 = scmp.eq.s32.totalorder %s20, 0
      %p103 = por %p101, %p102
      %p104 = scmp.ne.s32.totalorder %s96, %s98
      %p105 = scmp.eq.s32.totalorder %s25, 1
      %p106 = por %p104, %p105
      %p107 = scmp.ne.s32.totalorder %s98, %s99
      %p108 = scmp.eq.s32.totalorder %s25, 0
      %p109 = por %p107, %p108
      %p110 = scmp.ne.s32.totalorder %s98, %s99
      %p111 = scmp.eq.s32.totalorder %s26, 1
      %p112 = por %p110, %p111
      %p114 = scmp.ne.s32.totalorder %s99, %s113
      %p115 = scmp.eq.s32.totalorder %s26, 0
      %p116 = por %p114, %p115
      %s118 = sadd.s32 %s117, 1
      %p121 = scmp.eq.s32.totalorder %s20, 1
      %p122 = scmp.ne.s32.totalorder %s117, %s119
      %p123 = scmp.eq.s32.totalorder %s20, 0
      %p124 = por %p122, %p123
      %p125 = scmp.ne.s32.totalorder %s117, %s119
      %p126 = scmp.eq.s32.totalorder %s25, 1
      %p127 = por %p125, %p126
      %p128 = scmp.ne.s32.totalorder %s119, %s120
      %p129 = scmp.eq.s32.totalorder %s25, 0
      %p130 = por %p128, %p129
      %p131 = scmp.ne.s32.totalorder %s119, %s120
      %p132 = scmp.eq.s32.totalorder %s26, 1
      %p133 = por %p131, %p132
      %p135 = scmp.ne.s32.totalorder %s120, %s134
      %p136 = scmp.eq.s32.totalorder %s26, 0
      %p137 = por %p135, %p136
      %s139 = sadd.s32 %s138, 1
      %p142 = scmp.eq.s32.totalorder %s20, 1
      %p143 = scmp.ne.s32.totalorder %s138, %s140
      %p144 = scmp.eq.s32.totalorder %s20, 0
      %p145 = por %p143, %p144
      %p146 = scmp.ne.s32.totalorder %s138, %s140
      %p147 = scmp.eq.s32.totalorder %s25, 1
      %p148 = por %p146, %p147
      %p149 = scmp.ne.s32.totalorder %s140, %s141
      %p150 = scmp.eq.s32.totalorder %s25, 0
      %p151 = por %p149, %p150
      %p152 = scmp.ne.s32.totalorder %s140, %s141
      %p153 = scmp.eq.s32.totalorder %s26, 1
      %p154 = por %p152, %p153
      %p156 = scmp.ne.s32.totalorder %s141, %s155
      %p157 = scmp.eq.s32.totalorder %s26, 0
      %p158 = por %p156, %p157
      %s159 = ssub.s32 %s20, %s27
      %p160 = scmp.eq.s32.totalorder %s159, 0
      %s162 = sadd.s32 %s161, 1
      %s163 = scalar_select %p160, %s161, %s162
      %p166 = pneg %p160
      %p167 = scmp.eq.s32.totalorder %s20, 1
      %p168 = por %p166, %p167
      %p169 = scmp.ne.s32.totalorder %s161, %s164
      %p170 = scmp.eq.s32.totalorder %s20, 0
      %p171 = por %p169, %p170
      %p172 = scmp.ne.s32.totalorder %s161, %s164
      %p173 = scmp.eq.s32.totalorder %s25, 1
      %p174 = por %p172, %p173
      %p175 = scmp.ne.s32.totalorder %s164, %s165
      %p176 = scmp.eq.s32.totalorder %s25, 0
      %p177 = por %p175, %p176
      %p178 = scmp.ne.s32.totalorder %s164, %s165
      %p179 = scmp.eq.s32.totalorder %s26, 1
      %p180 = por %p178, %p179
      %p182 = scmp.ne.s32.totalorder %s165, %s181
      %p183 = scmp.eq.s32.totalorder %s26, 0
      %p184 = por %p182, %p183
      %p185 = scmp.le.s32.totalorder 1, %s20
      %p186 = scmp.lt.s32.totalorder %s20, 3
      %p187 = pnand %p185, %p186
      %p188 = pneg %p187
      // Predicated region
      $region9: #{tpu_custom_call.1} parent=5 // pred_check
        _
      $region10: #{tpu_custom_call.1} parent=5 // pred_check_branch
        %190 = sbr.rel (%p187) target = $region12
      $region11: #{tpu_custom_call.1} parent=5 // pred_region
        %s191 = ssub.s32 %s20, 1
        // Predicated region
        $region13: #{tpu_custom_call.1} parent=11 // pred_check
          %p192 = pneg %p67
        $region14: #{tpu_custom_call.1} parent=11 // pred_check_branch
          %194 = sbr.rel (%p192) target = $region16
        $region15: #{tpu_custom_call.1} parent=11 // pred_region
          %196 = vsyncadd [#allocation6], 0
          %s197 = sshll.u32 %s1, 4
          %s198 = int_to_ptr.hbm [resolvable:$true] %s197
          %s199 = sshll.u32 [#allocation5], 4
          %s200 = int_to_ptr.vmem [resolvable:$true] %s199
          %205 = dma.hbm_to_vmem [thread:$0]  %s198, 512, %s200, [#allocation6], 128, 128, 8
        $region16: #{tpu_custom_call.1} parent=11 // pred_fallthru
          _
        // Predicated region
        $region17: #{tpu_custom_call.1} parent=11 // pred_check
          %p206 = pneg %p88
        $region18: #{tpu_custom_call.1} parent=11 // pred_check_branch
          %208 = sbr.rel (%p206) target = $region20
        $region19: #{tpu_custom_call.1} parent=11 // pred_region
          _
        $region20: #{tpu_custom_call.1} parent=11 // pred_fallthru
          _
        // Predicated region
        $region21: #{tpu_custom_call.1} parent=11 // pred_check
          %p209 = pneg %p109
        $region22: #{tpu_custom_call.1} parent=11 // pred_check_branch
          %211 = sbr.rel (%p209) target = $region24
        $region23: #{tpu_custom_call.1} parent=11 // pred_region
          %213 = vsyncadd [#allocation6], 0
          %s214 = sshll.u32 %s3, 4
          %s215 = int_to_ptr.hbm [resolvable:$true] %s214
          %s216 = sshll.u32 [#allocation7], 4
          %s217 = int_to_ptr.vmem [resolvable:$true] %s216
          %222 = dma.hbm_to_vmem [thread:$0]  %s215, 512, %s217, [#allocation6], 128, 128, 8
        $region24: #{tpu_custom_call.1} parent=11 // pred_fallthru
          _
        // Predicated region
        $region25: #{tpu_custom_call.1} parent=11 // pred_check
          %p223 = pneg %p130
        $region26: #{tpu_custom_call.1} parent=11 // pred_check_branch
          %225 = sbr.rel (%p223) target = $region28
        $region27: #{tpu_custom_call.1} parent=11 // pred_region
          %227 = vsyncadd [#allocation9], 0
          %s228 = sshll.u32 %s4, 4
          %s229 = int_to_ptr.hbm [resolvable:$true] %s228
          %s230 = sshll.u32 [#allocation8], 4
          %s231 = int_to_ptr.vmem [resolvable:$true] %s230
          %236 = dma.hbm_to_vmem [thread:$0]  %s229, 512, %s231, [#allocation9], 128, 128, 8
        $region28: #{tpu_custom_call.1} parent=11 // pred_fallthru
          _
        // Predicated region
        $region29: #{tpu_custom_call.1} parent=11 // pred_check
          %p237 = pneg %p151
        $region30: #{tpu_custom_call.1} parent=11 // pred_check_branch
          %239 = sbr.rel (%p237) target = $region32
        $region31: #{tpu_custom_call.1} parent=11 // pred_region
          _
        $region32: #{tpu_custom_call.1} parent=11 // pred_fallthru
          _
      $region12: #{tpu_custom_call.1} parent=5 // pred_fallthru
        _
      %p240 = scmp.lt.s32.totalorder %s20, 2
      // Predicated region
      $region33: #{tpu_custom_call.1} parent=5 // pred_check
        %p241 = pneg %p240
      $region34: #{tpu_custom_call.1} parent=5 // pred_check_branch
        %243 = sbr.rel (%p241) target = $region36
      $region35: #{tpu_custom_call.1} parent=5 // pred_region
        // Predicated region
        $region37: #{tpu_custom_call.1} parent=35 // pred_check
          %p244 = pneg %p40
        $region38: #{tpu_custom_call.1} parent=35 // pred_check_branch
          %246 = sbr.rel (%p244) target = $region40
        $region39: #{tpu_custom_call.1} parent=35 // pred_region
          %s247 = sand.u32 %s30, 1
          %s248 = scalar_lea.sflag [#allocation3], %s247
          %s249 = sand.u32 %s30, 1
          %s250 = smul.addr %s249, 8
          %s251 = scalar_lea.vmem [#allocation2], %s250
          %253 = vsyncadd %s248, 0
          %s254 = smul.addr %s20, 8
          %s255 = scalar_lea.hbm %s0, %s254
          %s257 = sshll.u32 %s255, 4
          %s258 = int_to_ptr.hbm [resolvable:$true] %s257
          %s259 = sshll.u32 %s251, 4
          %s260 = int_to_ptr.vmem [resolvable:$true] %s259
          %262 = dma.hbm_to_vmem [thread:$0]  %s258, 128, %s260, %s248
        $region40: #{tpu_custom_call.1} parent=35 // pred_fallthru
          _
      $region36: #{tpu_custom_call.1} parent=5 // pred_fallthru
        _
      %p263 = scmp.le.s32.totalorder 1, %s20
      %p264 = scmp.lt.s32.totalorder %s20, 3
      %p265 = pnand %p263, %p264
      %p266 = pneg %p265
      // Predicated region
      $region41: #{tpu_custom_call.1} parent=5 // pred_check
        _
      $region42: #{tpu_custom_call.1} parent=5 // pred_check_branch
        %268 = sbr.rel (%p265) target = $region44
      $region43: #{tpu_custom_call.1} parent=5 // pred_region
        %s269 = ssub.s32 %s20, 1
        %s270 = sand.u32 %s33, 1
        %s271 = scalar_lea.sflag [#allocation3], %s270
        %s272 = sand.u32 %s33, 1
        %s273 = smul.addr %s272, 8
        %s274 = scalar_lea.vmem [#allocation2], %s273
        // Predicated region
        $region45: #{tpu_custom_call.1} parent=43 // pred_check
          %p275 = pneg %p46
        $region46: #{tpu_custom_call.1} parent=43 // pred_check_branch
          %277 = sbr.rel (%p275) target = $region48
        $region47: #{tpu_custom_call.1} parent=43 // pred_region
          %279 = dma.done %s271, 128
        $region48: #{tpu_custom_call.1} parent=43 // pred_fallthru
          _
        // Predicated region
        $region49: #{tpu_custom_call.1} parent=43 // pred_check
          %p280 = pneg %p67
        $region50: #{tpu_custom_call.1} parent=43 // pred_check_branch
          %282 = sbr.rel (%p280) target = $region52
        $region51: #{tpu_custom_call.1} parent=43 // pred_region
          %284 = dma.done [#allocation6], 512
        $region52: #{tpu_custom_call.1} parent=43 // pred_fallthru
          _
        // Predicated region
        $region53: #{tpu_custom_call.1} parent=43 // pred_check
          %p285 = pneg %p109
        $region54: #{tpu_custom_call.1} parent=43 // pred_check_branch
          %287 = sbr.rel (%p285) target = $region56
        $region55: #{tpu_custom_call.1} parent=43 // pred_region
          %289 = dma.done [#allocation6], 512
        $region56: #{tpu_custom_call.1} parent=43 // pred_fallthru
          _
        // Predicated region
        $region57: #{tpu_custom_call.1} parent=43 // pred_check
          %p290 = pneg %p130
        $region58: #{tpu_custom_call.1} parent=43 // pred_check_branch
          %292 = sbr.rel (%p290) target = $region60
        $region59: #{tpu_custom_call.1} parent=43 // pred_region
          %294 = dma.done [#allocation9], 512
        $region60: #{tpu_custom_call.1} parent=43 // pred_fallthru
          _
        %s295 = sand.u32 %s33, 1
        %s296 = scalar_lea.sflag [#allocation3], %s295
        %s297 = sand.u32 %s33, 1
        %s298 = smul.addr %s297, 8
        %s299 = scalar_lea.vmem [#allocation2], %s298
        %p300 = pneg %p46
        %p301 = pneg %p43
        %p302 = pneg %p67
        %p303 = pneg %p64
        %p304 = pneg %p88
        %p305 = pneg %p85
        %p306 = pneg %p109
        %p307 = pneg %p106
        %p308 = pneg %p130
        %p309 = pneg %p127
        %p310 = pneg %p151
        %p311 = pneg %p148
        %p312 = pneg %p177
        %p313 = pneg %p174
        %s314 = sand.u32 %s164, 1
        %s315 = scalar_lea.sflag [#allocation4], %s314
        %s316 = sand.u32 %s164, 1
        %s317 = smul.addr %s316, 8
        %s318 = scalar_lea.vmem [#allocation10], %s317
        %v319 = vld [vmem:[%s274] sm:$0xff]
        %v320 = vld [vmem:[#allocation5] sm:$0xff]
        %v321 = vld [vmem:[#allocation5 + $0x8] sm:$0xff]
        %v322 = vld [vmem:[#allocation5 + $0x10] sm:$0xff]
        %v323 = vld [vmem:[#allocation5 + $0x18] sm:$0xff]
        %v324 = vld [vmem:[%s2] sm:$0x1]
        %v326 = vperm.slane %v324, 0
        %vm328 = vcmask 261120
        %v330 = vsel %vm328, %v319, 0
        %332 = vmatpush.msra.mxu0 0.0
        %333 = vmatpush.msra.mxu0 0.0
        %334 = vmatpush.msra.mxu0 0.0
        %335 = vmatpush.msra.mxu0 0.0
        %336 = vmatpush.msra.mxu0 0.0
        %337 = vmatpush.msra.mxu0 0.0
        %338 = vmatpush.msra.mxu0 0.0
        %339 = vmatpush.msra.mxu0 0.0
        %340 = vmatpush.msra.mxu0 0.0
        %341 = vmatpush.msra.mxu0 0.0
        %342 = vmatpush.msra.mxu0 0.0
        %343 = vmatpush.msra.mxu0 0.0
        %344 = vmatpush.msra.mxu0 %v323
        %345 = vmatpush.msra.mxu0 %v322
        %346 = vmatpush.msra.mxu0 %v321
        %347 = vmatpush.msra.mxu0 %v320
        %348 = vmatmul.f32.gmra.mxu0 %v330
        %v349 = vpop.f32.mrf.mxu0
        %v350 = vadd.f32 %v326, %v349
        %351 = vdwg.mxu0
        %v352 = vmax.f32 %v350, 0.0
        %v353 = vld [vmem:[#allocation7] sm:$0xff]
        %v354 = vld [vmem:[#allocation7 + $0x8] sm:$0xff]
        %v355 = vld [vmem:[#allocation7 + $0x10] sm:$0xff]
        %v356 = vld [vmem:[#allocation7 + $0x18] sm:$0xff]
        %v357 = vld [vmem:[#allocation8] sm:$0xff]
        %v358 = vld [vmem:[#allocation8 + $0x8] sm:$0xff]
        %v359 = vld [vmem:[#allocation8 + $0x10] sm:$0xff]
        %v360 = vld [vmem:[#allocation8 + $0x18] sm:$0xff]
        %v362 = vsel %vm328, %v352, 0
        %364 = vmatpush.msra.mxu0 0.0
        %365 = vmatpush.msra.mxu0 0.0
        %366 = vmatpush.msra.mxu0 0.0
        %367 = vmatpush.msra.mxu0 0.0
        %368 = vmatpush.msra.mxu0 0.0
        %369 = vmatpush.msra.mxu0 0.0
        %370 = vmatpush.msra.mxu0 0.0
        %371 = vmatpush.msra.mxu0 0.0
        %372 = vmatpush.msra.mxu0 0.0
        %373 = vmatpush.msra.mxu0 0.0
        %374 = vmatpush.msra.mxu0 0.0
        %375 = vmatpush.msra.mxu0 0.0
        %376 = vmatpush.msra.mxu0 %v360
        %377 = vmatpush.msra.mxu0 %v359
        %378 = vmatpush.msra.mxu0 %v358
        %379 = vmatpush.msra.mxu0 %v357
        %380 = vmatmul.f32.gmra.mxu0 %v362
        %v381 = vpop.f32.mrf.mxu0
        %v382 = vadd.f32 0.0, %v381
        %383 = vdwg.mxu0
        %384 = vmatpush.msra.mxu0 0.0
        %385 = vmatpush.msra.mxu0 0.0
        %386 = vmatpush.msra.mxu0 0.0
        %387 = vmatpush.msra.mxu0 0.0
        %388 = vmatpush.msra.mxu0 0.0
        %389 = vmatpush.msra.mxu0 0.0
        %390 = vmatpush.msra.mxu0 0.0
        %391 = vmatpush.msra.mxu0 0.0
        %392 = vmatpush.msra.mxu0 0.0
        %393 = vmatpush.msra.mxu0 0.0
        %394 = vmatpush.msra.mxu0 0.0
        %395 = vmatpush.msra.mxu0 0.0
        %396 = vmatpush.msra.mxu0 %v356
        %397 = vmatpush.msra.mxu0 %v355
        %398 = vmatpush.msra.mxu0 %v354
        %399 = vmatpush.msra.mxu0 %v353
        %400 = vmatmul.f32.gmra.mxu0 %v330
        %v401 = vpop.f32.mrf.mxu0
        %v402 = vadd.f32 %v382, %v401
        %403 = vdwg.mxu0
        %v404 = vld [vmem:[%s5] sm:$0x1]
        %v406 = vperm.slane %v404, 0
        %v408 = vadd.f32 %v402, %v406
        %v409 = vlaneseq
        %v410 = vand.u32 %v409, 127
        %vm411 = vcmp.lt.s32.totalorder %v410, 120
        %v412 = vsel %vm411, %v408, -1e+30
        %413 = vmax.xlane.f32.xlu0 %v412
        %v414 = vpop.xlane.xlu0 %413
        %v415 = vsub.f32 %v412, %v414
        %v416 = vmul.f32 %v415, 1.442695
        %v417 = vpow.pop %v416
        %418 = vadd.xlane.f32.xlu0 %v417
        %v419 = vpop.xlane.xlu0 %418
        %v420 = vrcp.pop %v419
        %v421 = vmul.f32 %v419, %v420
        %v422 = vsub.f32 1.0, %v421
        %v423 = vmul.f32 %v420, %v422
        %v424 = vadd.f32 %v420, %v423
        %vm425 = vweird.f32 %v419
        %vm426 = vweird.f32 %v420
        %vm427 = vmor %vm425, %vm426
        %v428 = vsel %vm427, %v420, %v424
        %v429 = vand.u32 2147483647, %v419
        %vm430 = vcmp.eq.f32.partialorder %v429, 8.507059e+37
        %v431 = vand.u32 %v419, 2147483648
        %v432 = vor.u32 1.1754944e-38, %v431
        %v433 = vsel %vm430, %v432, %v428
        %v434 = vmul.f32 %v417, %v433
        %v435 = vsel %vm411, %v434, %v408
        %436 = vst [vmem:[%s318] sm:$0xff] %v435
        %s437 = sand.u32 %s164, 1
        %s438 = scalar_lea.sflag [#allocation4], %s437
        %s439 = sand.u32 %s164, 1
        %s440 = smul.addr %s439, 8
        %s441 = scalar_lea.vmem [#allocation10], %s440
        // Predicated region
        $region61: #{tpu_custom_call.1} parent=43 // pred_check
          %p442 = pneg %p174
        $region62: #{tpu_custom_call.1} parent=43 // pred_check_branch
          %444 = sbr.rel (%p442) target = $region64
        $region63: #{tpu_custom_call.1} parent=43 // pred_region
          %446 = vsyncadd %s438, 0
          %s447 = smul.addr %s25, 8
          %s448 = scalar_lea.hbm %s6, %s447
          %s450 = sshll.u32 %s441, 4
          %s451 = int_to_ptr.vmem [resolvable:$true] %s450
          %s452 = sshll.u32 %s448, 4
          %s453 = int_to_ptr.hbm [resolvable:$true] %s452
          %455 = dma.vmem_to_hbm [thread:$0]  %s451, 128, %s453, %s438
        $region64: #{tpu_custom_call.1} parent=43 // pred_fallthru
          _
      $region44: #{tpu_custom_call.1} parent=5 // pred_fallthru
        _
      %p456 = scmp.le.s32.totalorder 2, %s20
      // Predicated region
      $region65: #{tpu_custom_call.1} parent=5 // pred_check
        %p457 = pneg %p456
      $region66: #{tpu_custom_call.1} parent=5 // pred_check_branch
        %459 = sbr.rel (%p457) target = $region68
      $region67: #{tpu_custom_call.1} parent=5 // pred_region
        %s460 = ssub.s32 %s20, 2
        // Predicated region
        $region69: #{tpu_custom_call.1} parent=67 // pred_check
          %p461 = pneg %p180
        $region70: #{tpu_custom_call.1} parent=67 // pred_check_branch
          %463 = sbr.rel (%p461) target = $region72
        $region71: #{tpu_custom_call.1} parent=67 // pred_region
          %s464 = sand.u32 %s165, 1
          %s465 = scalar_lea.sflag [#allocation4], %s464
          %s466 = sand.u32 %s165, 1
          %s467 = smul.addr %s466, 8
          %s468 = scalar_lea.vmem [#allocation10], %s467
          %470 = dma.done %s465, 128
        $region72: #{tpu_custom_call.1} parent=67 // pred_fallthru
          _
      $region68: #{tpu_custom_call.1} parent=5 // pred_fallthru
        _
    $region6: #{tpu_custom_call.1} parent=1 // loop_footer
      %s24 = sadd.s32 1, %s20
    $region7: #{tpu_custom_call.1} parent=1 // loop_footer_branch
      %19 = sbr.rel target = $region3
    $region8: #{tpu_custom_call.1} parent=1 // loop_exit
      _
    %471 = vsyncpa [#allocation3], 1
    %s472 = scalar_lea.sflag [#allocation3], 1
    %473 = vsyncpa %s472, 1
    %474 = vsyncpa [#allocation6], 1
    %475 = vsyncpa [#allocation9], 1
    %476 = vsyncpa [#allocation4], 1
    %s477 = scalar_lea.sflag [#allocation4], 1
    %478 = vsyncpa %s477, 1

</llo_original>
